<compile_context>
chip_gen: v6e
topology: v6e:2x2x1
jax: 0.10.0
libtpu: 0.0.40
codegen_flags: <defaults>
</compile_context>

<pallas_src>
import functools

import jax
import jax.numpy as jnp
from jax.experimental import pallas as pl
from jax.experimental.pallas import tpu as pltpu


_UNROLL_MAX_W = 24          # unrolled shift-add for W <= this, prefix-sum above
_STEP_BYTES_TARGET = 2 << 20  # ~2 MiB of input streamed per grid step
_PREFIX_ROWS_CAP = 2048       # precision guard for the prefix-sum path


def _round_up(x: int, m: int) -> int:
    return ((x + m - 1) // m) * m


def _vmem_capacity_bytes() -> int:
    """Generation-aware VMEM capacity; conservative v7x default on failure."""
    try:
        info = pltpu.get_tpu_info()
        cap = getattr(info, "vmem_capacity_bytes", None)
        if cap:
            return int(cap)
    except Exception:
        pass
    return 64 * 1024 * 1024


def _choose_t_tile(T: int, F: int, W: int, itemsize: int, pack: int,
                   vmem_limit: int) -> int:
    """Byte-budgeted T-tile rows (multiple of `pack`, or == T)."""
    min_rows = _round_up(W, pack)
    if T <= min_rows:
        return T
    # Per-row VMEM cost: 2x input + 2x output (double-buffered) + f32 staging
    # + ~2 live f32 temporaries.
    per_row = F * (4 * itemsize + 12)
    rows_vmem = max(pack, ((vmem_limit // 2) // max(per_row, 1)) // pack * pack)
    rows_bytes = _round_up(max(1, _STEP_BYTES_TARGET // max(F * itemsize, 1)), pack)
    rows = max(min_rows, min(rows_bytes, rows_vmem))
    if W > _UNROLL_MAX_W:
        rows = min(rows, max(min_rows, _PREFIX_ROWS_CAP))
    if rows >= T:
        # Whole sequence fits in one step.  If it still carries >= 1 MiB, split
        # it in two so the pipeline / v7x's second TensorCore get work.
        if T * F * itemsize >= (1 << 20) and T >= 2 * min_rows:
            half = _round_up(-(-T // 2), pack)
            return max(min_rows, min(half, T))
        return T
    return rows


def _sma_kernel(seed_ref, x_ref, o_ref, stage_ref, *, win_length: int,
                halo_rows: int, padding):
    """One (batch', T-tile) step.

    seed_ref : (P, F)  f32   halo rows x[t*tT-(W-1) : t*tT] (zero-filled at t==0)
    x_ref    : (tT, F) in-dtype
    o_ref    : (tT, F) in-dtype
    stage_ref: (S, F)  f32 scratch, S = P + round_up(tT, 8)
    """
    W = win_length
    P = halo_rows
    tT, F = x_ref.shape
    S = stage_ref.shape[0]
    base = P - (W - 1)
    t = pl.program_id(1)

    # Stage halo + tile in f32 once per step.  The tile store lands at row P
    # (a multiple of 8) so it is sublane-aligned, and the dtype cast happens
    # exactly once (not once per window shift).
    stage_ref[:P, :] = seed_ref[...]
    stage_ref[P:P + tT, :] = x_ref[...].astype(jnp.float32)
    if S > P + tT:  # zero the (static) alignment tail rows
        stage_ref[P + tT:, :] = jnp.zeros((S - P - tT, F), jnp.float32)

    if W <= _UNROLL_MAX_W:
        # Small/medium window: unrolled shift-add over VMEM slices of staging.
        acc = stage_ref[base:base + tT, :]
        for k in range(1, W):
            acc = acc + stage_ref[base + k:base + k + tT, :]
    else:
        # Large window: Hillis-Steele inclusive prefix sum over the staged rows.
        # Shifts via pltpu.roll (XLU slot) + masked add — no concatenate copies.
        # Rows [0, base) are zero so they do not perturb the running sum.
        yy = stage_ref[...]                                       # (S, F) f32
        row = jax.lax.broadcasted_iota(jnp.int32, (S, F), 0)
        s = yy
        shift = 1
        while shift < S:
            s = s + jnp.where(row >= shift, pltpu.roll(s, shift=shift, axis=0), 0.0)
            shift *= 2
        # windowed sum for output row i: cs[P + i] - cs[base + i - 1]  (cs[-1]:=0)
        if base >= 1:
            sub = s[base - 1:base - 1 + tT, :]
        else:
            sub = jnp.where(row[:tT, :] >= 1,
                            pltpu.roll(s, shift=1, axis=0)[:tT, :], 0.0)
        acc = s[P:P + tT, :] - sub

    ma = acc * (1.0 / W)                                          # (tT, F) f32
    o_ref[...] = ma.astype(o_ref.dtype)

    # First tile: overwrite the first W-1 rows with the module's padding head.
    @pl.when(t == 0)
    def _():
        if padding is None:
            # Original first W-1 timesteps, stored directly in the input dtype.
            o_ref[:W - 1, :] = x_ref[:W - 1, :]
        else:  # 'avg'
            first = ma[W - 1:W, :]                                # first pooled value
            o_ref[:W - 1, :] = jnp.broadcast_to(first, (W - 1, F)).astype(o_ref.dtype)


def simple_moving_average(x: jax.Array, win_length: int, padding=None,
                          *, t_tile_rows=None) -> jax.Array:
    """Pallas equivalent of SimpleMovingAverage.forward.

    x: (B, T, C) or (T, C). Returns (B, T, C) (matches PyTorch, which returns
    3-D even for a 2-D input).
    """
    if padding not in (None, "avg"):
        raise ValueError(f"unsupported padding: {padding!r}")
    if x.ndim == 2:
        x = x[None, ...]
    if x.ndim != 3:
        raise ValueError("expected (B, T, C) or (T, C) input")
    B, T, C = x.shape
    W = int(win_length)
    if W < 1:
        raise ValueError("win_length must be >= 1")
    if T < W:
        raise ValueError("sequence length must be >= win_length")
    if W == 1:
        # AvgPool1d(kernel=1, stride=1) is the identity and the head is empty.
        return x

    # --- lane-densify narrow channel dims: (B, T, C) -> (1, T, B*C) ------------
    densify = (C < 128) and (B > 1)
    if densify:
        x2 = jnp.transpose(x, (1, 0, 2)).reshape(1, T, B * C)
    else:
        x2 = x
    Bp, _, F = x2.shape
    itemsize = x2.dtype.itemsize
    pack = max(8, 32 // itemsize)       # sublane packing: 8 f32 / 16 bf16 / 32 i8

    vmem_cap = _vmem_capacity_bytes()
    vmem_limit = int(min(max(vmem_cap * 3 // 4, 32 << 20), 100 << 20))

    if t_tile_rows is None:
        tT = _choose_t_tile(T, F, W, itemsize, pack, vmem_limit)
    else:
        tT = int(t_tile_rows)
        if tT >= T:
            tT = T
        else:
            if tT % pack != 0:
                raise ValueError(f"t_tile_rows must be a multiple of {pack} (or >= T)")
            if tT < W:
                raise ValueError("t_tile_rows must be >= win_length")
    nT = pl.cdiv(T, tT)

    # --- per-tile halo seeds (removes the sequential carry entirely) -----------
    # seeds[b, t, P-(W-1):, :] = x2[b, t*tT-(W-1) : t*tT, :]; zeros at t == 0 and
    # in the unused alignment-padding head rows.
    P = _round_up(W - 1, 8)             # f32 staging head rows (sublane aligned)
    S = P + _round_up(tT, 8)            # staging scratch rows
    starts = jnp.arange(nT, dtype=jnp.int32) * tT
    j = jnp.arange(P, dtype=jnp.int32)
    row_idx = starts[:, None] + (j - P)[None, :]                   # (nT, P)
    valid = (j[None, :] >= (P - (W - 1))) & (row_idx >= 0)
    gathered = jnp.take(x2, jnp.clip(row_idx, 0, T - 1), axis=1)   # (Bp, nT, P, F)
    seeds = jnp.where(valid[None, :, :, None], gathered, 0).astype(jnp.float32)

    kernel = functools.partial(_sma_kernel, win_length=W, halo_rows=P,
                               padding=padding)

    out2 = pl.pallas_call(
        kernel,
        out_shape=jax.ShapeDtypeStruct((Bp, T, F), x2.dtype),
        grid_spec=pltpu.PrefetchScalarGridSpec(
            num_scalar_prefetch=0,
            grid=(Bp, nT),
            in_specs=[
                pl.BlockSpec((None, None, P, F), lambda b, t: (b, t, 0, 0)),  # seeds
                pl.BlockSpec((None, tT, F), lambda b, t: (b, t, 0)),          # x
            ],
            out_specs=pl.BlockSpec((None, tT, F), lambda b, t: (b, t, 0)),
            scratch_shapes=[pltpu.VMEM((S, F), jnp.float32)],
        ),
        compiler_params=pltpu.CompilerParams(
            # No cross-step carry: every (batch', T-tile) is independent, so
            # both axes are parallel (megacore sharding even when B == 1).
            dimension_semantics=("parallel", "parallel"),
            vmem_limit_bytes=vmem_limit,
        ),
    )(seeds, x2)

    if densify:
        return jnp.transpose(out2.reshape(T, B, C), (1, 0, 2))
    return out2


def _reference(x: jax.Array, win_length: int, padding=None) -> jax.Array:
    """Pure-JAX reference mirroring the PyTorch forward."""
    if x.ndim == 2:
        x = x[None, ...]
    B, T, C = x.shape
    W = win_length
    n_out = T - W + 1
    windows = jnp.stack([x[:, k:k + n_out, :] for k in range(W)], axis=0)
    ma = jnp.mean(windows, axis=0)  # (B, n_out, C)
    if padding is None:
        head = x[:, :W - 1, :]
    elif padding == "avg":
        head = jnp.repeat(ma[:, :1, :], W - 1, axis=1)
    else:
        raise ValueError(padding)
    return jnp.concatenate([head, ma], axis=1)


if __name__ == "__main__":
    key = jax.random.PRNGKey(0)
    B, T, C = 2, 16, 32
    W = 4
    x = jax.random.normal(key, (B, T, C), dtype=jnp.float32)

    # padding=None (module default); C < 128 & B > 1 -> lane-densified path
    out = jax.block_until_ready(simple_moving_average(x, W, padding=None))
    assert out.shape == (B, T, C)
    assert jnp.allclose(out, _reference(x, W, None), atol=1e-5, rtol=1e-5)

    # padding='avg'
    out_avg = jax.block_until_ready(simple_moving_average(x, W, padding="avg"))
    assert jnp.allclose(out_avg, _reference(x, W, "avg"), atol=1e-5, rtol=1e-5)

    # 2-D input path (auto-unsqueeze to batch 1, no wrapper transpose)
    x2d = jax.random.normal(jax.random.PRNGKey(1), (T, C), dtype=jnp.float32)
    out2d = jax.block_until_ready(simple_moving_average(x2d, W))
    assert out2d.shape == (1, T, C)
    assert jnp.allclose(out2d, _reference(x2d, W, None), atol=1e-5, rtol=1e-5)

    # multi-T-tile path with halo seeds, including a partial last tile (T=20, tT=8)
    Tl = 20
    xl = jax.random.normal(jax.random.PRNGKey(2), (B, Tl, C), dtype=jnp.float32)
    o1 = jax.block_until_ready(simple_moving_average(xl, W, None, t_tile_rows=8))
    assert jnp.allclose(o1, _reference(xl, W, None), atol=1e-5, rtol=1e-5)
    o2 = jax.block_until_ready(simple_moving_average(xl, W, "avg", t_tile_rows=8))
    assert jnp.allclose(o2, _reference(xl, W, "avg"), atol=1e-5, rtol=1e-5)

    # large-window path (prefix-sum via pltpu.roll), multi-tile halo seeds
    Tw, Ww = 96, 32
    xw = jax.random.normal(jax.random.PRNGKey(3), (B, Tw, C), dtype=jnp.float32)
    ow = jax.block_until_ready(
        simple_moving_average(xw, Ww, "avg", t_tile_rows=48))
    assert jnp.allclose(ow, _reference(xw, Ww, "avg"), atol=1e-4, rtol=1e-4)

    # bf16 path (sublane packing = 16), multi-tile
    xb = jax.random.normal(jax.random.PRNGKey(4), (B, 64, C), dtype=jnp.bfloat16)
    ob = jax.block_until_ready(
        simple_moving_average(xb, W, None, t_tile_rows=16))
    assert jnp.allclose(ob.astype(jnp.float32),
                        _reference(xb.astype(jnp.float32), W, None),
                        atol=3e-2, rtol=3e-2)

    print("KERNEL_OK")
</pallas_src>

<mosaic_0001>
module attributes {stable_mosaic.version = 11 : i64} {
  func.func @_sma_kernel(%arg0: i32, %arg1: i32, %arg2: memref<1x1x8x64xf32, #tpu.memory_space<vmem>>, %arg3: memref<1x16x64xf32, #tpu.memory_space<vmem>>, %arg4: memref<1x16x64xf32, #tpu.memory_space<vmem>>, %arg5: memref<24x64xf32, #tpu.memory_space<vmem>>) attributes {dimension_semantics = [#tpu.dimension_semantics<parallel>, #tpu.dimension_semantics<parallel>], iteration_bounds = array<i64: 1, 1>, scalar_prefetch = 0 : i64, scratch_operands = 1 : i64, tpu.core_type = #tpu.core_type<tc>, window_params = [{transform_indices = @transform_0, window_bounds = array<i64: 1, 1, 8, 64>}, {transform_indices = @transform_1, window_bounds = array<i64: 1, 16, 64>}, {transform_indices = @transform_2, window_bounds = array<i64: 1, 16, 64>}]} {
    %c0 = arith.constant 0 : index
    %c0_0 = arith.constant 0 : index
    %c0_1 = arith.constant 0 : index
    %c0_2 = arith.constant 0 : index
    %0 = vector.load %arg2[%c0, %c0_0, %c0_1, %c0_2] : memref<1x1x8x64xf32, #tpu.memory_space<vmem>>, vector<1x1x8x64xf32>
    %1 = vector.shape_cast %0 : vector<1x1x8x64xf32> to vector<8x64xf32>
    %c0_3 = arith.constant 0 : index
    %c0_4 = arith.constant 0 : index
    %2 = vector.load %arg5[%c0_3, %c0_4] : memref<24x64xf32, #tpu.memory_space<vmem>>, vector<8x64xf32>
    tpu.vector_store %arg5[%c0_3, %c0_4], %1 {strides = array<i32>} : memref<24x64xf32, #tpu.memory_space<vmem>>, vector<8x64xf32>,
    %c0_5 = arith.constant 0 : index
    %c0_6 = arith.constant 0 : index
    %c0_7 = arith.constant 0 : index
    %3 = vector.load %arg3[%c0_5, %c0_6, %c0_7] : memref<1x16x64xf32, #tpu.memory_space<vmem>>, vector<1x16x64xf32>
    %4 = vector.shape_cast %3 : vector<1x16x64xf32> to vector<16x64xf32>
    %c8 = arith.constant 8 : index
    %c0_8 = arith.constant 0 : index
    %5 = vector.load %arg5[%c8, %c0_8] : memref<24x64xf32, #tpu.memory_space<vmem>>, vector<16x64xf32>
    tpu.vector_store %arg5[%c8, %c0_8], %4 {strides = array<i32>} : memref<24x64xf32, #tpu.memory_space<vmem>>, vector<16x64xf32>,
    %c5 = arith.constant 5 : index
    %c0_9 = arith.constant 0 : index
    %6 = vector.load %arg5[%c5, %c0_9] : memref<24x64xf32, #tpu.memory_space<vmem>>, vector<16x64xf32>
    %c6 = arith.constant 6 : index
    %c0_10 = arith.constant 0 : index
    %7 = vector.load %arg5[%c6, %c0_10] : memref<24x64xf32, #tpu.memory_space<vmem>>, vector<16x64xf32>
    %8 = arith.addf %6, %7 : vector<16x64xf32>
    %c7 = arith.constant 7 : index
    %c0_11 = arith.constant 0 : index
    %9 = vector.load %arg5[%c7, %c0_11] : memref<24x64xf32, #tpu.memory_space<vmem>>, vector<16x64xf32>
    %10 = arith.addf %8, %9 : vector<16x64xf32>
    %c8_12 = arith.constant 8 : index
    %c0_13 = arith.constant 0 : index
    %11 = vector.load %arg5[%c8_12, %c0_13] : memref<24x64xf32, #tpu.memory_space<vmem>>, vector<16x64xf32>
    %12 = arith.addf %10, %11 : vector<16x64xf32>
    %cst = arith.constant 2.500000e-01 : f32
    %13 = vector.broadcast %cst : f32 to vector<16x64xf32>
    %14 = arith.mulf %12, %13 : vector<16x64xf32>
    %c0_14 = arith.constant 0 : index
    %c0_15 = arith.constant 0 : index
    %c0_16 = arith.constant 0 : index
    %15 = vector.load %arg4[%c0_14, %c0_15, %c0_16] : memref<1x16x64xf32, #tpu.memory_space<vmem>>, vector<1x16x64xf32>
    %16 = vector.shape_cast %15 : vector<1x16x64xf32> to vector<16x64xf32>
    %17 = vector.shape_cast %14 : vector<16x64xf32> to vector<1x16x64xf32>
    tpu.vector_store %arg4[%c0_14, %c0_15, %c0_16], %17 {strides = array<i32>} : memref<1x16x64xf32, #tpu.memory_space<vmem>>, vector<1x16x64xf32>,
    %c0_i32 = arith.constant 0 : i32
    %18 = arith.cmpi eq, %arg1, %c0_i32 : i32
    %19 = arith.extui %18 : i1 to i32
    %c0_i32_17 = arith.constant 0 : i32
    %20 = arith.cmpi ne, %19, %c0_i32_17 : i32
    scf.if %20 {
      %c0_18 = arith.constant 0 : index
      %c0_19 = arith.constant 0 : index
      %c0_20 = arith.constant 0 : index
      %21 = vector.load %arg3[%c0_18, %c0_19, %c0_20] : memref<1x16x64xf32, #tpu.memory_space<vmem>>, vector<1x3x64xf32>
      %22 = vector.shape_cast %21 : vector<1x3x64xf32> to vector<3x64xf32>
      %c0_21 = arith.constant 0 : index
      %c0_22 = arith.constant 0 : index
      %c0_23 = arith.constant 0 : index
      %23 = vector.load %arg4[%c0_21, %c0_22, %c0_23] : memref<1x16x64xf32, #tpu.memory_space<vmem>>, vector<1x3x64xf32>
      %24 = vector.shape_cast %23 : vector<1x3x64xf32> to vector<3x64xf32>
      %25 = vector.shape_cast %22 : vector<3x64xf32> to vector<1x3x64xf32>
      tpu.vector_store %arg4[%c0_21, %c0_22, %c0_23], %25 {strides = array<i32>} : memref<1x16x64xf32, #tpu.memory_space<vmem>>, vector<1x3x64xf32>,
    } else {
    }
    return
  }
  func.func @transform_0(%arg0: i32, %arg1: i32) -> (i32, i32, i32, i32) {
    %c0_i32 = arith.constant 0 : i32
    %c0_i32_0 = arith.constant 0 : i32
    %c0_i32_1 = arith.constant 0 : i32
    return %arg0, %arg1, %c0_i32, %c0_i32_0 : i32, i32, i32, i32
  }
  func.func @transform_1(%arg0: i32, %arg1: i32) -> (i32, i32, i32) {
    %c0_i32 = arith.constant 0 : i32
    %c0_i32_0 = arith.constant 0 : i32
    return %arg0, %arg1, %c0_i32 : i32, i32, i32
  }
  func.func @transform_2(%arg0: i32, %arg1: i32) -> (i32, i32, i32) {
    %c0_i32 = arith.constant 0 : i32
    %c0_i32_0 = arith.constant 0 : i32
    return %arg0, %arg1, %c0_i32 : i32, i32, i32
  }
}

</mosaic_0001>

<llo_original>
// kernel: tpu_custom_call.1
$region0: #{tpu_custom_call.1}
  #allocation0 [shape = 'u32[]', space=smem, size = 0x4, offset = 0x4, fixed_abs, tag = 'smem constant byte address 0x4 - core index']
  #allocation1 [shape = 'u32[144,128]{1,0:T(1,128)}', space=vmem, size = 0x12000, scoped, tag = 'internal scratch']
  #allocation2 [shape = 'f32[24,64]{1,0:T(8,128)}', space=vmem, size = 0x3000, scoped, tag = 'scratch operand']
  %s0 = inlined_call_operand.hbm [shape: f32[1,1,8,64], index: 0, kind: input, shape index: {}]
  %s1 = inlined_call_operand.hbm [shape: f32[1,16,64], index: 1, kind: input, shape index: {}]
  %s2 = inlined_call_operand.hbm [shape: f32[1,16,64], index: 2, kind: output, shape index: {}]
  %s3 = sld [smem:[#allocation0]]
  $region30: #{tpu_custom_call.1} parent=0
    _
  %s5 = ssub.s32 1, %s3
  %s6 = scalar_select 0, %s5, %s3
  $region1: #{tpu_custom_call.1} parent=0
    #allocation3 [shape = 'u8[4096]{0}', space=vmem, size = 0x1000, scoped, tag = 'input window, operand 0, single buffered']
    #allocation4 [shape = 's32[1]{0}', space=sflag, size = 0x4, scoped, tag = 'scoped memory for tpu_custom_call.1']
    #allocation5 [shape = 's32[1]{0}', space=sflag, size = 0x4, scoped, tag = 'scoped memory for tpu_custom_call.1']
    #allocation6 [shape = 'u8[8192]{0}', space=vmem, size = 0x2000, scoped, tag = 'input window, operand 1, single buffered']
    #allocation7 [shape = 's32[1]{0}', space=sflag, size = 0x4, scoped, tag = 'scoped memory for tpu_custom_call.1']
    #allocation8 [shape = 'u8[8192]{0}', space=vmem, size = 0x2000, scoped, tag = 'output window, operand 0, single buffered']
    %7 = vsyncpa [#allocation4], 0
    %8 = vsyncpa [#allocation7], 0
    %9 = vsyncpa [#allocation5], 0
    // Predicated region
    $region2: #{tpu_custom_call.1} parent=1 // pred_check
      _
    $region3: #{tpu_custom_call.1} parent=1 // pred_check_branch
      %11 = sbr.rel (0) target = $region5
    $region4: #{tpu_custom_call.1} parent=1 // pred_region
      %s13 = ssub.s32 128, 128
      %14 = vsyncadd [#allocation4], %s13
      %s16 = sshll.u32 [#allocation3], 4
      %s17 = int_to_ptr.vmem [resolvable:$true] %s16
      %19 = dma.hbm_to_vmem [thread:$0]  %s0, 128, %s17, [#allocation4]
    $region5: #{tpu_custom_call.1} parent=1 // pred_fallthru
      _
    // Predicated region
    $region6: #{tpu_custom_call.1} parent=1 // pred_check
      _
    $region7: #{tpu_custom_call.1} parent=1 // pred_check_branch
      %21 = sbr.rel (0) target = $region9
    $region8: #{tpu_custom_call.1} parent=1 // pred_region
      %s23 = ssub.s32 256, 256
      %24 = vsyncadd [#allocation7], %s23
      %s25 = sshll.u32 [#allocation6], 4
      %s26 = int_to_ptr.vmem [resolvable:$true] %s25
      %31 = dma.hbm_to_vmem [thread:$0]  %s1, 256, %s26, [#allocation7], 128, 128, 8
    $region9: #{tpu_custom_call.1} parent=1 // pred_fallthru
      _
    // Predicated region
    $region10: #{tpu_custom_call.1} parent=1 // pred_check
      _
    $region11: #{tpu_custom_call.1} parent=1 // pred_check_branch
      %33 = sbr.rel (0) target = $region13
    $region12: #{tpu_custom_call.1} parent=1 // pred_region
      %34 = dma.done [#allocation4], 128
    $region13: #{tpu_custom_call.1} parent=1 // pred_fallthru
      _
    // Predicated region
    $region14: #{tpu_custom_call.1} parent=1 // pred_check
      _
    $region15: #{tpu_custom_call.1} parent=1 // pred_check_branch
      %36 = sbr.rel (0) target = $region17
    $region16: #{tpu_custom_call.1} parent=1 // pred_region
      %37 = dma.done [#allocation7], 256
    $region17: #{tpu_custom_call.1} parent=1 // pred_fallthru
      _
    %v38 = vld [vmem:[#allocation3] sm:$0xff]
    %vm39 = vcmask 523264
    %40 = vst.msk [vmem:[#allocation2] sm:$0xff] %vm39, %v38
    %v41 = vld [vmem:[#allocation6] sm:$0xff]
    %v42 = vld [vmem:[#allocation6 + $0x8] sm:$0xff]
    %43 = vst.msk [vmem:[#allocation2 + $0x8] sm:$0xff] %vm39, %v41
    %44 = vst.msk [vmem:[#allocation2 + $0x10] sm:$0xff] %vm39, %v42
    %v45 = vld [vmem:[#allocation2 + $0x5] sm:$0xff]
    %v46 = vld [vmem:[#allocation2 + $0xd] sm:$0xff]
    %v47 = vld [vmem:[#allocation2 + $0x6] sm:$0xff]
    %v48 = vld [vmem:[#allocation2 + $0xe] sm:$0xff]
    %v49 = vadd.f32 %v45, %v47
    %v50 = vadd.f32 %v46, %v48
    %v51 = vld [vmem:[#allocation2 + $0x7] sm:$0xff]
    %v52 = vld [vmem:[#allocation2 + $0xf] sm:$0xff]
    %v53 = vadd.f32 %v49, %v51
    %v54 = vadd.f32 %v50, %v52
    %v55 = vld [vmem:[#allocation2 + $0x8] sm:$0xff]
    %v56 = vld [vmem:[#allocation2 + $0x10] sm:$0xff]
    %v57 = vadd.f32 %v53, %v55
    %v58 = vadd.f32 %v54, %v56
    %v59 = vmul.f32 %v57, 0.25
    %v60 = vmul.f32 %v58, 0.25
    %61 = vst.msk [vmem:[#allocation8] sm:$0xff] %vm39, %v59
    %62 = vst.msk [vmem:[#allocation8 + $0x8] sm:$0xff] %vm39, %v60
    %p63 = scmp.eq.s32.totalorder 0, 0
    // Predicated region
    $region18: #{tpu_custom_call.1} parent=1 // pred_check
      %p64 = pneg %p63
    $region19: #{tpu_custom_call.1} parent=1 // pred_check_branch
      %66 = sbr.rel (%p64) target = $region21
    $region20: #{tpu_custom_call.1} parent=1 // pred_region
      %v67 = vld [vmem:[#allocation6] sm:$0x7]
      %vm68 = vcmask 518144
      %69 = vst.msk [vmem:[#allocation8] sm:$0x7] %vm68, %v67
    $region21: #{tpu_custom_call.1} parent=1 // pred_fallthru
      _
    // Predicated region
    $region22: #{tpu_custom_call.1} parent=1 // pred_check
      _
    $region23: #{tpu_custom_call.1} parent=1 // pred_check_branch
      %71 = sbr.rel (0) target = $region25
    $region24: #{tpu_custom_call.1} parent=1 // pred_region
      %s73 = ssub.s32 256, 256
      %74 = vsyncadd [#allocation5], %s73
      %s75 = sshll.u32 [#allocation8], 4
      %s76 = int_to_ptr.vmem [resolvable:$true] %s75
      %81 = dma.vmem_to_hbm [thread:$0]  %s76, 256, %s2, [#allocation5], 128, 128, 8
    $region25: #{tpu_custom_call.1} parent=1 // pred_fallthru
      _
    // Predicated region
    $region26: #{tpu_custom_call.1} parent=1 // pred_check
      _
    $region27: #{tpu_custom_call.1} parent=1 // pred_check_branch
      %83 = sbr.rel (0) target = $region29
    $region28: #{tpu_custom_call.1} parent=1 // pred_region
      %84 = dma.done [#allocation5], 256
    $region29: #{tpu_custom_call.1} parent=1 // pred_fallthru
      _
    %85 = vsyncpa [#allocation4], 1
    %86 = vsyncpa [#allocation7], 1
    %87 = vsyncpa [#allocation5], 1

</llo_original>
